<compile_context>
chip_gen: v5e
topology: v5e:2x2
jax: 0.10.0
libtpu: 0.0.40
codegen_flags: <defaults>
</compile_context>

<pallas_src>
import math

import jax
import jax.numpy as jnp
from jax.experimental import pallas as pl
from jax.experimental.pallas import tpu as pltpu


def _drop_path_kernel(x_ref, scale_ref, o_ref):
    # x_ref: (r_tile, 128) in x.dtype, scale_ref: (r_tile, 1) float32.
    # Pure streaming broadcast-multiply; promote to f32, cast result back.
    o_ref[...] = (x_ref[...].astype(jnp.float32) * scale_ref[...]).astype(o_ref.dtype)


def _pick_row_tile(num_rows, itemsize, target_bytes=4 * 1024 * 1024):
    """Row tile giving ~target_bytes per x block, aligned to the sublane
    packing for the dtype (8 rows for 32-bit, 16 for 16-bit, 32 for 8-bit).
    No divisibility requirement on num_rows: ragged edge handled by cdiv."""
    align = {4: 8, 2: 16, 1: 32}.get(itemsize, 8)
    tile = max(align, target_bytes // (128 * itemsize))
    tile -= tile % align
    if tile >= num_rows:
        return num_rows  # full-dim block, always legal
    return tile


def drop_path(x, drop_prob, training, key=None):
    """DropPath forward. x: (N, ...) any trailing dims. Same shape/dtype out."""
    if drop_prob is None or float(drop_prob) == 0.0 or not training:
        return x

    keep_prob = 1.0 - float(drop_prob)
    if key is None:
        key = jax.random.PRNGKey(0)

    orig_shape = x.shape
    orig_dtype = x.dtype
    N = orig_shape[0]
    D = int(math.prod(orig_shape[1:]))

    # Flatten each sample and pad its length to a multiple of 128 lanes.
    x2d = x.reshape(N, D)
    pad = (-D) % 128
    if pad:
        x2d = jnp.pad(x2d, ((0, 0), (0, pad)))
    Dp = D + pad
    S = Dp // 128                      # rows per sample in the (R, 128) slab
    R = N * S

    itemsize = jnp.dtype(orig_dtype).itemsize
    r_tile = _pick_row_tile(R, itemsize)
    num_r = pl.cdiv(R, r_tile)

    # Per-sample Bernoulli(keep_prob) mask and scale (float math matches the
    # torch floor(keep_prob + U[0,1)) formulation), expanded to one float32
    # scalar per slab row.
    u = jax.random.uniform(key, (N,), dtype=jnp.float32)
    keep = jnp.floor(keep_prob + u)                      # 0.0 or 1.0 per sample
    scale = keep * (1.0 / keep_prob)                     # 0 or 1/keep_prob
    scale_rows = jnp.broadcast_to(scale[:, None], (N, S)).reshape(R, 1)

    x_slab = x2d.reshape(R, 128)

    # VMEM budget: double-buffered in + out x blocks + scale blocks + margin.
    block_bytes = r_tile * 128 * itemsize
    scale_block_bytes = r_tile * 4
    vmem_limit = int(2 * (2 * block_bytes + scale_block_bytes) + (2 << 20))
    vmem_limit = max(4 << 20, min(vmem_limit, 32 << 20))

    out_slab = pl.pallas_call(
        _drop_path_kernel,
        out_shape=jax.ShapeDtypeStruct((R, 128), orig_dtype),
        grid=(num_r,),
        in_specs=[
            pl.BlockSpec((r_tile, 128), lambda r: (r, 0)),
            pl.BlockSpec((r_tile, 1), lambda r: (r, 0)),
        ],
        out_specs=pl.BlockSpec((r_tile, 128), lambda r: (r, 0)),
        compiler_params=pltpu.CompilerParams(
            dimension_semantics=("parallel",),
            vmem_limit_bytes=vmem_limit,
        ),
    )(x_slab, scale_rows)

    out2d = out_slab.reshape(N, Dp)
    if pad:
        out2d = out2d[:, :D]
    return out2d.reshape(orig_shape)


class DropPathModule:
    """Mirror of the PyTorch DropPath module (forward only)."""

    def __init__(self, drop_prob=None):
        self.drop_prob = drop_prob
        self.training = True

    def __call__(self, x, key=None):
        return drop_path(x, self.drop_prob, self.training, key=key)


def _check_samples(x, y, keep_prob):
    for n in range(x.shape[0]):
        xn, yn = x[n], y[n]
        is_dropped = bool(jnp.allclose(yn, 0.0))
        is_kept = bool(jnp.allclose(yn, xn / keep_prob, rtol=1e-6, atol=1e-6))
        assert is_dropped or is_kept, "sample is neither dropped nor scaled-kept"


if __name__ == "__main__":
    key = jax.random.PRNGKey(0)
    kx, kd, kx2, kd2 = jax.random.split(key, 4)

    drop_prob = 0.3
    keep_prob = 1.0 - drop_prob
    mod = DropPathModule(drop_prob=drop_prob)
    mod.training = True

    # Lane-aligned shape (per-sample size 4*16*16 = 1024).
    x = jax.random.normal(kx, (2, 4, 16, 16), dtype=jnp.float32)
    y = jax.block_until_ready(mod(x, key=kd))
    assert y.shape == x.shape and y.dtype == x.dtype
    _check_samples(x, y, keep_prob)

    # Non-lane-aligned shape exercises the padding path (per-sample 5*7*9=315).
    x2 = jax.random.normal(kx2, (3, 5, 7, 9), dtype=jnp.float32)
    y2 = jax.block_until_ready(mod(x2, key=kd2))
    assert y2.shape == x2.shape
    _check_samples(x2, y2, keep_prob)

    # Eval mode / drop_prob=0 pass-through checks.
    mod.training = False
    y_eval = jax.block_until_ready(mod(x, key=kd))
    assert bool(jnp.allclose(y_eval, x))

    mod2 = DropPathModule(drop_prob=0.0)
    mod2.training = True
    y_zero = jax.block_until_ready(mod2(x, key=kd))
    assert bool(jnp.allclose(y_zero, x))

    print("KERNEL_OK")
</pallas_src>

<mosaic_0001>
module attributes {stable_mosaic.version = 11 : i64} {
  func.func @_drop_path_kernel(%arg0: i32, %arg1: memref<16x128xf32, #tpu.memory_space<vmem>>, %arg2: memref<16x1xf32, #tpu.memory_space<vmem>>, %arg3: memref<16x128xf32, #tpu.memory_space<vmem>>) attributes {dimension_semantics = [#tpu.dimension_semantics<parallel>], iteration_bounds = array<i64: 1>, scalar_prefetch = 0 : i64, scratch_operands = 0 : i64, tpu.core_type = #tpu.core_type<tc>, window_params = [{transform_indices = @transform_0, window_bounds = array<i64: 16, 128>}, {transform_indices = @transform_1, window_bounds = array<i64: 16, 1>}, {transform_indices = @transform_2, window_bounds = array<i64: 16, 128>}]} {
    %c0 = arith.constant 0 : index
    %c0_0 = arith.constant 0 : index
    %0 = vector.load %arg1[%c0, %c0_0] : memref<16x128xf32, #tpu.memory_space<vmem>>, vector<16x128xf32>
    %c0_1 = arith.constant 0 : index
    %c0_2 = arith.constant 0 : index
    %1 = vector.load %arg2[%c0_1, %c0_2] : memref<16x1xf32, #tpu.memory_space<vmem>>, vector<16x1xf32>
    %2 = vector.broadcast %1 : vector<16x1xf32> to vector<16x128xf32>
    %3 = arith.mulf %0, %2 : vector<16x128xf32>
    %c0_3 = arith.constant 0 : index
    %c0_4 = arith.constant 0 : index
    %4 = vector.load %arg3[%c0_3, %c0_4] : memref<16x128xf32, #tpu.memory_space<vmem>>, vector<16x128xf32>
    tpu.vector_store %arg3[%c0_3, %c0_4], %3 {strides = array<i32>} : memref<16x128xf32, #tpu.memory_space<vmem>>, vector<16x128xf32>,
    return
  }
  func.func @transform_0(%arg0: i32) -> (i32, i32) {
    %c0_i32 = arith.constant 0 : i32
    %c0_i32_0 = arith.constant 0 : i32
    return %arg0, %c0_i32 : i32, i32
  }
  func.func @transform_1(%arg0: i32) -> (i32, i32) {
    %c0_i32 = arith.constant 0 : i32
    %c0_i32_0 = arith.constant 0 : i32
    return %arg0, %c0_i32 : i32, i32
  }
  func.func @transform_2(%arg0: i32) -> (i32, i32) {
    %c0_i32 = arith.constant 0 : i32
    %c0_i32_0 = arith.constant 0 : i32
    return %arg0, %c0_i32 : i32, i32
  }
}

</mosaic_0001>

<llo_original>
// kernel: tpu_custom_call.1
$region0: #{tpu_custom_call.1}
  #allocation0 [shape = 'u32[]', space=smem, size = 0x4, offset = 0x4, fixed_abs, tag = 'smem constant byte address 0x4 - core index']
  #allocation1 [shape = 'u32[72,128]{1,0:T(1,128)}', space=vmem, size = 0x9000, scoped, tag = 'internal scratch']
  %s0 = inlined_call_operand.vmem [shape: f32[16,128], index: 0, kind: input, shape index: {}]
  %s1 = inlined_call_operand.vmem [shape: f32[16,1], index: 1, kind: input, shape index: {}]
  %s2 = inlined_call_operand.hbm [shape: f32[16,128], index: 2, kind: output, shape index: {}]
  %s3 = sld [smem:[#allocation0]]
  $region18: #{tpu_custom_call.1} parent=0
    _
  %s5 = ssub.s32 1, %s3
  %s6 = scalar_select 0, %s5, %s3
  $region1: #{tpu_custom_call.1} parent=0
    #allocation2 [shape = 'u8[8192]{0}', space=vmem, size = 0x2000, scoped, tag = 'output window, operand 0, single buffered']
    #allocation3 [shape = 's32[1]{0}', space=sflag, size = 0x4, scoped, tag = 'scoped memory for tpu_custom_call.1']
    %7 = vsyncpa [#allocation3], 0
    // Predicated region
    $region2: #{tpu_custom_call.1} parent=1 // pred_check
      _
    $region3: #{tpu_custom_call.1} parent=1 // pred_check_branch
      %9 = sbr.rel (0) target = $region5
    $region4: #{tpu_custom_call.1} parent=1 // pred_region
      _
    $region5: #{tpu_custom_call.1} parent=1 // pred_fallthru
      _
    // Predicated region
    $region6: #{tpu_custom_call.1} parent=1 // pred_check
      _
    $region7: #{tpu_custom_call.1} parent=1 // pred_check_branch
      %11 = sbr.rel (0) target = $region9
    $region8: #{tpu_custom_call.1} parent=1 // pred_region
      _
    $region9: #{tpu_custom_call.1} parent=1 // pred_fallthru
      _
    %v12 = vld [vmem:[%s0] sm:$0xff]
    %v13 = vld [vmem:[%s0 + $0x8] sm:$0xff]
    %v14 = vld [vmem:[%s1] sm:$0xff]
    %v15 = vld [vmem:[%s1 + $0x8] sm:$0xff]
    %17 = vset.pattern.permute.xlu0 0
    %18 = vperm.xlu0 %17, %v14
    %v19 = vpop.permute.xlu0 %18
    %22 = vset.pattern.permute.xlu0 0
    %23 = vperm.xlu0 %22, %v15
    %v24 = vpop.permute.xlu0 %23
    %v26 = vmul.f32 %v12, %v19
    %v27 = vmul.f32 %v13, %v24
    %28 = vst [vmem:[#allocation2] sm:$0xff] %v26
    %29 = vst [vmem:[#allocation2 + $0x8] sm:$0xff] %v27
    // Predicated region
    $region10: #{tpu_custom_call.1} parent=1 // pred_check
      _
    $region11: #{tpu_custom_call.1} parent=1 // pred_check_branch
      %31 = sbr.rel (0) target = $region13
    $region12: #{tpu_custom_call.1} parent=1 // pred_region
      %33 = vsyncadd [#allocation3], 0
      %s34 = sshll.u32 [#allocation2], 4
      %s35 = int_to_ptr.vmem [resolvable:$true] %s34
      %s36 = sshll.u32 %s2, 4
      %s37 = int_to_ptr.hbm [resolvable:$true] %s36
      %42 = dma.vmem_to_hbm [thread:$0]  %s35, 256, %s37, [#allocation3], 128, 128, 8
    $region13: #{tpu_custom_call.1} parent=1 // pred_fallthru
      _
    // Predicated region
    $region14: #{tpu_custom_call.1} parent=1 // pred_check
      _
    $region15: #{tpu_custom_call.1} parent=1 // pred_check_branch
      %44 = sbr.rel (0) target = $region17
    $region16: #{tpu_custom_call.1} parent=1 // pred_region
      %46 = dma.done [#allocation3], 256
    $region17: #{tpu_custom_call.1} parent=1 // pred_fallthru
      _
    %47 = vsyncpa [#allocation3], 1

</llo_original>
